<compile_context>
chip_gen: v7x
topology: tpu7x:2x2x1
jax: 0.10.0
libtpu: 0.0.40
codegen_flags: <defaults>
</compile_context>

<pallas_src>
import math

import jax
import jax.numpy as jnp
from jax import lax
from jax.experimental import pallas as pl
from jax.experimental.pallas import tpu as pltpu


def _gelu_tanh(x):
    # PyTorch F.gelu(x, approximate='tanh'):
    # 0.5 * x * (1 + tanh(sqrt(2/pi) * (x + 0.044715 * x^3)))
    c = 0.7978845608028654  # sqrt(2/pi)
    return 0.5 * x * (1.0 + jnp.tanh(c * (x + 0.044715 * x * x * x)))


def _round_up(a, b):
    return (a + b - 1) // b * b


def mlp_kernel(x_ref, w1_ref, b1_ref, w2_ref, b2_ref, o_ref, acc_ref):
    """One (token-tile i, intermediate-tile k) grid step.

    x_ref : (tm, E)  token tile (native dtype, fed straight to the MXU)
    w1_ref: (ti, E)  fc.weight slice   (rows k*ti .. k*ti+ti)
    b1_ref: (1, ti)  fc.bias slice
    w2_ref: (E, ti)  proj.weight slice (cols k*ti .. k*ti+ti)
    b2_ref: (1, E)   proj.bias
    o_ref : (tm, E)  output tile (written on the last k step)
    acc_ref: (tm, E) f32 accumulator scratch, lives across the k axis
    """
    k = pl.program_id(1)

    @pl.when(k == 0)
    def _():
        acc_ref[...] = jnp.zeros_like(acc_ref)

    # h_k = x @ fc_w_k.T -> (tm, ti); operands stay in native dtype, MXU
    # accumulates in f32 (no explicit f32 upcast of the matmul inputs).
    h = lax.dot_general(
        x_ref[...], w1_ref[...],
        dimension_numbers=(((1,), (1,)), ((), ())),
        preferred_element_type=jnp.float32,
    ) + b1_ref[...].astype(jnp.float32)

    # GELU epilogue in f32 (VPU/EUP), only on this (tm, ti) slab.
    g = _gelu_tanh(h)

    # acc += gelu(h_k) @ proj_w_k.T -> (tm, E)
    acc_ref[...] += lax.dot_general(
        g.astype(w2_ref.dtype), w2_ref[...],
        dimension_numbers=(((1,), (1,)), ((), ())),
        preferred_element_type=jnp.float32,
    )

    @pl.when(k == pl.num_programs(1) - 1)
    def _():
        o_ref[...] = (acc_ref[...]
                      + b2_ref[...].astype(jnp.float32)).astype(o_ref.dtype)


def mlp_pallas(x, fc_w, fc_b, proj_w, proj_b, *, tm=256, ti=512):
    """Fused MLP forward.

    x:      (B, S, E)
    fc_w:   (I, E)   -- PyTorch nn.Linear layout, passed untransposed
    fc_b:   (I,)
    proj_w: (E, I)   -- PyTorch nn.Linear layout, passed untransposed
    proj_b: (E,)
    """
    B, S, E = x.shape
    I = fc_w.shape[0]
    assert fc_w.shape == (I, E)
    assert proj_w.shape == (E, I)

    T = B * S

    # Token tile: as large as requested, but clamped / 8-aligned for tiny inputs.
    tm = min(tm, _round_up(T, 8))
    T_pad = _round_up(T, tm)

    # Intermediate (reduction) tile: lane-aligned and dividing I.
    ti = min(ti, I)
    assert I % ti == 0, f"intermediate_size={I} must be divisible by ti={ti}"
    assert ti % 128 == 0 or ti == I

    x2 = x.reshape(T, E)
    if T_pad != T:
        x2 = jnp.pad(x2, ((0, T_pad - T), (0, 0)))

    b1 = fc_b.reshape(1, I)
    b2 = proj_b.reshape(1, E)

    grid = (T_pad // tm, I // ti)

    # Rough VMEM working set: double-buffered blocks + the f32 accumulator.
    # Keep the scoped limit comfortably under the v7x 64 MiB physical budget.
    itemsize = x.dtype.itemsize
    block_bytes = (tm * E + ti * E + ti + E * ti + E + tm * E) * itemsize
    est = 2 * block_bytes + tm * E * 4
    vmem_limit = int(min(max(2 * est, 32 * 1024 * 1024), 56 * 1024 * 1024))

    cost = pl.CostEstimate(
        flops=4 * T * E * I,          # two (T,E)x(E,I)-sized matmuls
        transcendentals=T * I,        # tanh inside the GELU
        bytes_accessed=(x2.size + fc_w.size + proj_w.size + T * E) * itemsize
        + (fc_b.size + proj_b.size) * fc_b.dtype.itemsize,
    )

    # NOTE: the output lane width is E; for narrow toy E (<128) stores are
    # masked -- real transformer E values (multiples of 128) are lane-dense.
    out = pl.pallas_call(
        mlp_kernel,
        out_shape=jax.ShapeDtypeStruct((T_pad, E), x.dtype),
        grid_spec=pltpu.PrefetchScalarGridSpec(
            num_scalar_prefetch=0,
            grid=grid,
            in_specs=[
                pl.BlockSpec((tm, E), lambda i, k: (i, 0)),   # x tile
                pl.BlockSpec((ti, E), lambda i, k: (k, 0)),   # fc.weight slice
                pl.BlockSpec((1, ti), lambda i, k: (0, k)),   # fc.bias slice
                pl.BlockSpec((E, ti), lambda i, k: (0, k)),   # proj.weight slice
                pl.BlockSpec((1, E), lambda i, k: (0, 0)),    # proj.bias
            ],
            out_specs=pl.BlockSpec((tm, E), lambda i, k: (i, 0)),
            scratch_shapes=[pltpu.VMEM((tm, E), jnp.float32)],
        ),
        compiler_params=pltpu.CompilerParams(
            dimension_semantics=("parallel", "arbitrary"),
            vmem_limit_bytes=vmem_limit,
        ),
        cost_estimate=cost,
    )(x2, fc_w, b1, proj_w, b2)

    if T_pad != T:
        out = out[:T]
    return out.reshape(B, S, E)


def mlp_reference(x, fc_w, fc_b, proj_w, proj_b):
    x32 = x.astype(jnp.float32)
    h = jnp.einsum("bse,ie->bsi", x32, fc_w.astype(jnp.float32)) \
        + fc_b.astype(jnp.float32)
    g = _gelu_tanh(h)
    return jnp.einsum("bsi,ei->bse", g, proj_w.astype(jnp.float32)) \
        + proj_b.astype(jnp.float32)


def _make_params(key, n_embed, intermediate_size, dtype):
    k_x, k_w1, k_b1, k_w2, k_b2 = jax.random.split(key, 5)
    lim1 = 1.0 / math.sqrt(n_embed)
    lim2 = 1.0 / math.sqrt(intermediate_size)
    fc_w = jax.random.uniform(k_w1, (intermediate_size, n_embed),
                              jnp.float32, -lim1, lim1).astype(dtype)
    fc_b = jax.random.uniform(k_b1, (intermediate_size,),
                              jnp.float32, -lim1, lim1).astype(dtype)
    proj_w = jax.random.uniform(k_w2, (n_embed, intermediate_size),
                                jnp.float32, -lim2, lim2).astype(dtype)
    proj_b = jax.random.uniform(k_b2, (n_embed,),
                                jnp.float32, -lim2, lim2).astype(dtype)
    return k_x, fc_w, fc_b, proj_w, proj_b


if __name__ == "__main__":
    # TODO(synk): apply_tensor_parallel / funcol.all_reduce (distributed TP) is
    # not modeled; this is the single-device forward pass.

    # ---- test 1: f32, small Phi-like toy config (single grid step) ----------
    n_embed, intermediate_size = 32, 128
    batch, seq = 2, 8
    key = jax.random.PRNGKey(0)
    k_x, fc_w, fc_b, proj_w, proj_b = _make_params(
        key, n_embed, intermediate_size, jnp.float32)
    x = jax.random.normal(k_x, (batch, seq, n_embed), jnp.float32)

    out = jax.block_until_ready(mlp_pallas(x, fc_w, fc_b, proj_w, proj_b))
    ref = mlp_reference(x, fc_w, fc_b, proj_w, proj_b)
    assert out.shape == (batch, seq, n_embed)
    assert jnp.allclose(out.astype(jnp.float32), ref, atol=1e-4, rtol=1e-4)

    # ---- test 2: bf16 operands, padded token tile + 2-step K reduction ------
    n_embed2, intermediate2 = 32, 256
    batch2, seq2 = 2, 12                    # T = 24 -> padded to 32 with tm=16
    key2 = jax.random.PRNGKey(0)
    k_x2, fc_w2, fc_b2, proj_w2, proj_b2 = _make_params(
        key2, n_embed2, intermediate2, jnp.bfloat16)
    x2 = jax.random.normal(k_x2, (batch2, seq2, n_embed2),
                           jnp.float32).astype(jnp.bfloat16)

    out2 = jax.block_until_ready(
        mlp_pallas(x2, fc_w2, fc_b2, proj_w2, proj_b2, tm=16, ti=128))
    ref2 = mlp_reference(x2, fc_w2, fc_b2, proj_w2, proj_b2)
    assert out2.shape == (batch2, seq2, n_embed2)
    assert jnp.allclose(out2.astype(jnp.float32), ref2, atol=5e-2, rtol=5e-2)

    print("KERNEL_OK")
</pallas_src>

<mosaic_0001>
module attributes {stable_mosaic.version = 11 : i64} {
  func.func @mlp_kernel(%arg0: i32, %arg1: i32, %arg2: memref<16x32xf32, #tpu.memory_space<vmem>>, %arg3: memref<128x32xf32, #tpu.memory_space<vmem>>, %arg4: memref<1x128xf32, #tpu.memory_space<vmem>>, %arg5: memref<32x128xf32, #tpu.memory_space<vmem>>, %arg6: memref<1x32xf32, #tpu.memory_space<vmem>>, %arg7: memref<16x32xf32, #tpu.memory_space<vmem>>, %arg8: memref<16x32xf32, #tpu.memory_space<vmem>>) attributes {dimension_semantics = [#tpu.dimension_semantics<parallel>, #tpu.dimension_semantics<arbitrary>], iteration_bounds = array<i64: 1, 1>, scalar_prefetch = 0 : i64, scratch_operands = 1 : i64, tpu.core_type = #tpu.core_type<tc>, window_params = [{transform_indices = @transform_0, window_bounds = array<i64: 16, 32>}, {transform_indices = @transform_1, window_bounds = array<i64: 128, 32>}, {transform_indices = @transform_2, window_bounds = array<i64: 1, 128>}, {transform_indices = @transform_3, window_bounds = array<i64: 32, 128>}, {pipeline_mode = #tpu.pipeline_mode<synchronous>, transform_indices = @transform_4, window_bounds = array<i64: 1, 32>}, {transform_indices = @transform_5, window_bounds = array<i64: 16, 32>}]} {
    %c0_i32 = arith.constant 0 : i32
    %0 = arith.cmpi eq, %arg1, %c0_i32 : i32
    %1 = arith.extui %0 : i1 to i32
    %c0_i32_0 = arith.constant 0 : i32
    %2 = arith.cmpi ne, %1, %c0_i32_0 : i32
    scf.if %2 {
      %cst_19 = arith.constant 0.000000e+00 : f32
      %30 = vector.broadcast %cst_19 : f32 to vector<16x32xf32>
      %c0_20 = arith.constant 0 : index
      %c0_21 = arith.constant 0 : index
      %31 = vector.load %arg8[%c0_20, %c0_21] : memref<16x32xf32, #tpu.memory_space<vmem>>, vector<16x32xf32>
      tpu.vector_store %arg8[%c0_20, %c0_21], %30 {strides = array<i32>} : memref<16x32xf32, #tpu.memory_space<vmem>>, vector<16x32xf32>,
    } else {
    }
    %c0 = arith.constant 0 : index
    %c0_1 = arith.constant 0 : index
    %3 = vector.load %arg2[%c0, %c0_1] : memref<16x32xf32, #tpu.memory_space<vmem>>, vector<16x32xf32>
    %c0_2 = arith.constant 0 : index
    %c0_3 = arith.constant 0 : index
    %4 = vector.load %arg3[%c0_2, %c0_3] : memref<128x32xf32, #tpu.memory_space<vmem>>, vector<128x32xf32>
    %cst = arith.constant dense<0.000000e+00> : vector<16x128xf32>
    %5 = tpu.matmul %3, %4, %cst {dimension_numbers = #tpu.dot_dimension_numbers<[1], [1], [0], [0], [0, 0, 1, 0], [], []>} : vector<16x32xf32>, vector<128x32xf32>, vector<16x128xf32> -> vector<16x128xf32>
    %c0_4 = arith.constant 0 : index
    %c0_5 = arith.constant 0 : index
    %6 = vector.load %arg4[%c0_4, %c0_5] : memref<1x128xf32, #tpu.memory_space<vmem>>, vector<1x128xf32>
    %7 = vector.broadcast %6 : vector<1x128xf32> to vector<16x128xf32>
    %8 = arith.addf %5, %7 : vector<16x128xf32>
    %cst_6 = arith.constant 5.000000e-01 : f32
    %9 = vector.broadcast %cst_6 : f32 to vector<16x128xf32>
    %10 = arith.mulf %9, %8 : vector<16x128xf32>
    %cst_7 = arith.constant 4.471500e-02 : f32
    %11 = vector.broadcast %cst_7 : f32 to vector<16x128xf32>
    %12 = arith.mulf %11, %8 : vector<16x128xf32>
    %13 = arith.mulf %12, %8 : vector<16x128xf32>
    %14 = arith.mulf %13, %8 : vector<16x128xf32>
    %15 = arith.addf %8, %14 : vector<16x128xf32>
    %cst_8 = arith.constant 0.797884583 : f32
    %16 = vector.broadcast %cst_8 : f32 to vector<16x128xf32>
    %17 = arith.mulf %16, %15 : vector<16x128xf32>
    %18 = math.tanh %17 : vector<16x128xf32>
    %cst_9 = arith.constant 1.000000e+00 : f32
    %19 = vector.broadcast %cst_9 : f32 to vector<16x128xf32>
    %20 = arith.addf %19, %18 : vector<16x128xf32>
    %21 = arith.mulf %10, %20 : vector<16x128xf32>
    %c0_10 = arith.constant 0 : index
    %c0_11 = arith.constant 0 : index
    %22 = vector.load %arg8[%c0_10, %c0_11] : memref<16x32xf32, #tpu.memory_space<vmem>>, vector<16x32xf32>
    %c0_12 = arith.constant 0 : index
    %c0_13 = arith.constant 0 : index
    %23 = vector.load %arg5[%c0_12, %c0_13] : memref<32x128xf32, #tpu.memory_space<vmem>>, vector<32x128xf32>
    %cst_14 = arith.constant dense<0.000000e+00> : vector<16x32xf32>
    %24 = tpu.matmul %21, %23, %cst_14 {dimension_numbers = #tpu.dot_dimension_numbers<[1], [1], [0], [0], [0, 0, 1, 0], [], []>} : vector<16x128xf32>, vector<32x128xf32>, vector<16x32xf32> -> vector<16x32xf32>
    %25 = arith.addf %22, %24 : vector<16x32xf32>
    %c0_15 = arith.constant 0 : index
    %c0_16 = arith.constant 0 : index
    %26 = vector.load %arg8[%c0_15, %c0_16] : memref<16x32xf32, #tpu.memory_space<vmem>>, vector<16x32xf32>
    tpu.vector_store %arg8[%c0_15, %c0_16], %25 {strides = array<i32>} : memref<16x32xf32, #tpu.memory_space<vmem>>, vector<16x32xf32>,
    %c0_i32_17 = arith.constant 0 : i32
    %27 = arith.cmpi eq, %arg1, %c0_i32_17 : i32
    %28 = arith.extui %27 : i1 to i32
    %c0_i32_18 = arith.constant 0 : i32
    %29 = arith.cmpi ne, %28, %c0_i32_18 : i32
    scf.if %29 {
      %c0_19 = arith.constant 0 : index
      %c0_20 = arith.constant 0 : index
      %30 = vector.load %arg8[%c0_19, %c0_20] : memref<16x32xf32, #tpu.memory_space<vmem>>, vector<16x32xf32>
      %c0_21 = arith.constant 0 : index
      %c0_22 = arith.constant 0 : index
      %31 = vector.load %arg6[%c0_21, %c0_22] : memref<1x32xf32, #tpu.memory_space<vmem>>, vector<1x32xf32>
      %32 = vector.broadcast %31 : vector<1x32xf32> to vector<16x32xf32>
      %33 = arith.addf %30, %32 : vector<16x32xf32>
      %c0_23 = arith.constant 0 : index
      %c0_24 = arith.constant 0 : index
      %34 = vector.load %arg7[%c0_23, %c0_24] : memref<16x32xf32, #tpu.memory_space<vmem>>, vector<16x32xf32>
      tpu.vector_store %arg7[%c0_23, %c0_24], %33 {strides = array<i32>} : memref<16x32xf32, #tpu.memory_space<vmem>>, vector<16x32xf32>,
    } else {
    }
    return
  }
  func.func @transform_0(%arg0: i32, %arg1: i32) -> (i32, i32) {
    %c0_i32 = arith.constant 0 : i32
    %c0_i32_0 = arith.constant 0 : i32
    return %arg0, %c0_i32 : i32, i32
  }
  func.func @transform_1(%arg0: i32, %arg1: i32) -> (i32, i32) {
    %c0_i32 = arith.constant 0 : i32
    %c0_i32_0 = arith.constant 0 : i32
    return %arg1, %c0_i32 : i32, i32
  }
  func.func @transform_2(%arg0: i32, %arg1: i32) -> (i32, i32) {
    %c0_i32 = arith.constant 0 : i32
    %c0_i32_0 = arith.constant 0 : i32
    return %c0_i32, %arg1 : i32, i32
  }
  func.func @transform_3(%arg0: i32, %arg1: i32) -> (i32, i32) {
    %c0_i32 = arith.constant 0 : i32
    %c0_i32_0 = arith.constant 0 : i32
    return %c0_i32, %arg1 : i32, i32
  }
  func.func @transform_4(%arg0: i32, %arg1: i32) -> (i32, i32) {
    %c0_i32 = arith.constant 0 : i32
    %c0_i32_0 = arith.constant 0 : i32
    %c0_i32_1 = arith.constant 0 : i32
    return %c0_i32, %c0_i32_0 : i32, i32
  }
  func.func @transform_5(%arg0: i32, %arg1: i32) -> (i32, i32) {
    %c0_i32 = arith.constant 0 : i32
    %c0_i32_0 = arith.constant 0 : i32
    return %arg0, %c0_i32 : i32, i32
  }
}

</mosaic_0001>

<llo_original>
// kernel: tpu_custom_call.1
$region0: #{tpu_custom_call.1}
  #allocation0 [shape = 'u32[]', space=smem, size = 0x4, offset = 0x4, fixed_abs, tag = 'smem constant byte address 0x4 - core index']
  #allocation1 [shape = 'u32[144,128]{1,0:T(1,128)}', space=vmem, size = 0x12000, scoped, tag = 'internal scratch']
  #allocation2 [shape = 'f32[16,32]{1,0:T(8,128)}', space=vmem, size = 0x2000, scoped, tag = 'scratch operand']
  %s0 = inlined_call_operand.vmem [shape: f32[16,32], index: 0, kind: input, shape index: {}]
  %s1 = inlined_call_operand.vmem [shape: f32[128,32], index: 1, kind: input, shape index: {}]
  %s2 = inlined_call_operand.vmem [shape: f32[1,128], index: 2, kind: input, shape index: {}]
  %s3 = inlined_call_operand.vmem [shape: f32[32,128], index: 3, kind: input, shape index: {}]
  %s4 = inlined_call_operand.vmem [shape: f32[1,32], index: 4, kind: input, shape index: {}]
  %s5 = inlined_call_operand.hbm [shape: f32[16,32], index: 5, kind: output, shape index: {}]
  %s6 = sld [smem:[#allocation0]]
  $region38: #{tpu_custom_call.1} parent=0
    _
  %s8 = ssub.s32 1, %s6
  %s9 = scalar_select 0, %s8, %s6
  $region1: #{tpu_custom_call.1} parent=0
    #allocation3 [shape = 'u8[8192]{0}', space=vmem, size = 0x2000, scoped, tag = 'output window, operand 0, single buffered']
    #allocation4 [shape = 's32[1]{0}', space=sflag, size = 0x4, scoped, tag = 'scoped memory for tpu_custom_call.1']
    %10 = vsyncpa [#allocation4], 0
    // Predicated region
    $region2: #{tpu_custom_call.1} parent=1 // pred_check
      _
    $region3: #{tpu_custom_call.1} parent=1 // pred_check_branch
      %12 = sbr.rel (0) target = $region5
    $region4: #{tpu_custom_call.1} parent=1 // pred_region
      _
    $region5: #{tpu_custom_call.1} parent=1 // pred_fallthru
      _
    // Predicated region
    $region6: #{tpu_custom_call.1} parent=1 // pred_check
      _
    $region7: #{tpu_custom_call.1} parent=1 // pred_check_branch
      %14 = sbr.rel (0) target = $region9
    $region8: #{tpu_custom_call.1} parent=1 // pred_region
      _
    $region9: #{tpu_custom_call.1} parent=1 // pred_fallthru
      _
    // Predicated region
    $region10: #{tpu_custom_call.1} parent=1 // pred_check
      _
    $region11: #{tpu_custom_call.1} parent=1 // pred_check_branch
      %16 = sbr.rel (0) target = $region13
    $region12: #{tpu_custom_call.1} parent=1 // pred_region
      _
    $region13: #{tpu_custom_call.1} parent=1 // pred_fallthru
      _
    // Predicated region
    $region14: #{tpu_custom_call.1} parent=1 // pred_check
      _
    $region15: #{tpu_custom_call.1} parent=1 // pred_check_branch
      %18 = sbr.rel (0) target = $region17
    $region16: #{tpu_custom_call.1} parent=1 // pred_region
      _
    $region17: #{tpu_custom_call.1} parent=1 // pred_fallthru
      _
    // Predicated region
    $region18: #{tpu_custom_call.1} parent=1 // pred_check
      _
    $region19: #{tpu_custom_call.1} parent=1 // pred_check_branch
      %20 = sbr.rel (0) target = $region21
    $region20: #{tpu_custom_call.1} parent=1 // pred_region
      _
    $region21: #{tpu_custom_call.1} parent=1 // pred_fallthru
      _
    %p21 = scmp.eq.s32.totalorder 0, 0
    // Predicated region
    $region22: #{tpu_custom_call.1} parent=1 // pred_check
      %p22 = pneg %p21
    $region23: #{tpu_custom_call.1} parent=1 // pred_check_branch
      %24 = sbr.rel (%p22) target = $region25
    $region24: #{tpu_custom_call.1} parent=1 // pred_region
      %vm25 = vcmask 261120
      %26 = vst.msk [vmem:[#allocation2] sm:$0xff] %vm25, 0.0
      %27 = vst.msk [vmem:[#allocation2 + $0x8] sm:$0xff] %vm25, 0.0
    $region25: #{tpu_custom_call.1} parent=1 // pred_fallthru
      _
    %v28 = vld [vmem:[%s0] sm:$0xff]
    %v29 = vld [vmem:[%s0 + $0x8] sm:$0xff]
    %v30 = vld [vmem:[%s1] sm:$0xff]
    %v31 = vld [vmem:[%s1 + $0x8] sm:$0xff]
    %v32 = vld [vmem:[%s1 + $0x10] sm:$0xff]
    %v33 = vld [vmem:[%s1 + $0x18] sm:$0xff]
    %v34 = vld [vmem:[%s1 + $0x20] sm:$0xff]
    %v35 = vld [vmem:[%s1 + $0x28] sm:$0xff]
    %v36 = vld [vmem:[%s1 + $0x30] sm:$0xff]
    %v37 = vld [vmem:[%s1 + $0x38] sm:$0xff]
    %v38 = vld [vmem:[%s1 + $0x40] sm:$0xff]
    %v39 = vld [vmem:[%s1 + $0x48] sm:$0xff]
    %v40 = vld [vmem:[%s1 + $0x50] sm:$0xff]
    %v41 = vld [vmem:[%s1 + $0x58] sm:$0xff]
    %v42 = vld [vmem:[%s1 + $0x60] sm:$0xff]
    %v43 = vld [vmem:[%s1 + $0x68] sm:$0xff]
    %v44 = vld [vmem:[%s1 + $0x70] sm:$0xff]
    %v45 = vld [vmem:[%s1 + $0x78] sm:$0xff]
    %v46 = vld [vmem:[%s2] sm:$0x1]
    %v48 = vlaneseq
    %v49 = vshrl.u32 %v48, 7
    %v50 = vsub.s32 0, %v49
    %v51 = vrot.slane %v46, %v50
    %vm53 = vcmask 261120
    %v55 = vsel %vm53, %v28, 0
    %v58 = vsel %vm53, %v29, 0
    %v61 = vsel %vm53, %v30, 0
    %v64 = vsel %vm53, %v31, 0
    %v67 = vsel %vm53, %v32, 0
    %v70 = vsel %vm53, %v33, 0
    %v73 = vsel %vm53, %v34, 0
    %v76 = vsel %vm53, %v35, 0
    %v79 = vsel %vm53, %v36, 0
    %v82 = vsel %vm53, %v37, 0
    %v85 = vsel %vm53, %v38, 0
    %v88 = vsel %vm53, %v39, 0
    %v91 = vsel %vm53, %v40, 0
    %v94 = vsel %vm53, %v41, 0
    %v97 = vsel %vm53, %v42, 0
    %v100 = vsel %vm53, %v43, 0
    %v103 = vsel %vm53, %v44, 0
    %v106 = vsel %vm53, %v45, 0
    %108 = vmatprep.subr.mxu0 0.0
    %109 = vmatpush1.xpose.msra.mxu0 %v61
    %110 = vmatprep.subr.mxu0 0.0
    %111 = vmatpush1.xpose.msra.mxu0 %v64
    %112 = vmatprep.subr.mxu0 0.0
    %113 = vmatpush1.xpose.msra.mxu0 %v67
    %114 = vmatprep.subr.mxu0 0.0
    %115 = vmatpush1.xpose.msra.mxu0 %v70
    %116 = vmatprep.subr.mxu0 0.0
    %117 = vmatpush1.xpose.msra.mxu0 %v73
    %118 = vmatprep.subr.mxu0 0.0
    %119 = vmatpush1.xpose.msra.mxu0 %v76
    %120 = vmatprep.subr.mxu0 0.0
    %121 = vmatpush1.xpose.msra.mxu0 %v79
    %122 = vmatprep.subr.mxu0 0.0
    %123 = vmatpush1.xpose.msra.mxu0 %v82
    %124 = vmatprep.subr.mxu0 0.0
    %125 = vmatpush1.xpose.msra.mxu0 %v85
    %126 = vmatprep.subr.mxu0 0.0
    %127 = vmatpush1.xpose.msra.mxu0 %v88
    %128 = vmatprep.subr.mxu0 0.0
    %129 = vmatpush1.xpose.msra.mxu0 %v91
    %130 = vmatprep.subr.mxu0 0.0
    %131 = vmatpush1.xpose.msra.mxu0 %v94
    %132 = vmatprep.subr.mxu0 0.0
    %133 = vmatpush1.xpose.msra.mxu0 %v97
    %134 = vmatprep.subr.mxu0 0.0
    %135 = vmatpush1.xpose.msra.mxu0 %v100
    %136 = vmatprep.subr.mxu0 0.0
    %137 = vmatpush1.xpose.msra.mxu0 %v103
    %138 = vmatprep.subr.mxu0 0.0
    %139 = vmatpush1.xpose.msra.mxu0 %v106
    %140 = vmatprep.subr.mxu0 0.0
    %141 = vmatpush1.xpose.msra.mxu0 0.0
    %142 = vmatprep.subr.mxu0 0.0
    %143 = vmatpush1.xpose.msra.mxu0 0.0
    %144 = vmatprep.subr.mxu0 0.0
    %145 = vmatpush1.xpose.msra.mxu0 0.0
    %146 = vmatprep.subr.mxu0 0.0
    %147 = vmatpush1.xpose.msra.mxu0 0.0
    %148 = vmatprep.subr.mxu0 0.0
    %149 = vmatpush1.xpose.msra.mxu0 0.0
    %150 = vmatprep.subr.mxu0 0.0
    %151 = vmatpush1.xpose.msra.mxu0 0.0
    %152 = vmatprep.subr.mxu0 0.0
    %153 = vmatpush1.xpose.msra.mxu0 0.0
    %154 = vmatprep.subr.mxu0 0.0
    %155 = vmatpush1.xpose.msra.mxu0 0.0
    %156 = vmatprep.subr.mxu0 0.0
    %157 = vmatpush1.xpose.msra.mxu0 0.0
    %158 = vmatprep.subr.mxu0 0.0
    %159 = vmatpush1.xpose.msra.mxu0 0.0
    %160 = vmatprep.subr.mxu0 0.0
    %161 = vmatpush1.xpose.msra.mxu0 0.0
    %162 = vmatprep.subr.mxu0 0.0
    %163 = vmatpush1.xpose.msra.mxu0 0.0
    %164 = vmatprep.subr.mxu0 0.0
    %165 = vmatpush1.xpose.msra.mxu0 0.0
    %166 = vmatprep.subr.mxu0 0.0
    %167 = vmatpush1.xpose.msra.mxu0 0.0
    %168 = vmatprep.subr.mxu0 0.0
    %169 = vmatpush1.xpose.msra.mxu0 0.0
    %170 = vmatprep.subr.mxu0 0.0
    %171 = vmatpush1.xpose.msra.mxu0 0.0
    %172 = vmatprep.mubr.f32.mxu0 0.0
    %173 = vmatmul.mubr.f32.gmra.mrb[0].mxu0 %v55
    %v174 = vpop.f32.mrb[0].mxu0
    %v175 = vadd.f32 %v51, %v174
    %v176 = vpop.f32.mrb[0].mxu0
    %177 = vmatprep.mubr.f32.mxu0 0.0
    %178 = vmatmul.mubr.f32.gmra.mrb[0].mxu0 %v58
    %v179 = vpop.f32.mrb[0].mxu0
    %v180 = vadd.f32 %v51, %v179
    %v181 = vpop.f32.mrb[0].mxu0
    %182 = vdwg.mxu0
    %v183 = vmul.f32 %v175, 0.5
    %v184 = vmul.f32 %v180, 0.5
    %v185 = vmul.f32 %v175, 0.044715
    %v186 = vmul.f32 %v180, 0.044715
    %v187 = vmul.f32 %v185, %v175
    %v188 = vmul.f32 %v186, %v180
    %v189 = vmul.f32 %v187, %v175
    %v190 = vmul.f32 %v188, %v180
    %v191 = vadd.f32 %v175, %v189
    %v192 = vadd.f32 %v180, %v190
    %v193 = vmul.f32 %v191, 0.7978846
    %v194 = vmul.f32 %v192, 0.7978846
    %v195 = vtanh.pop %v193
    %v196 = vtanh.pop %v194
    %v197 = vadd.f32 %v195, 1.0
    %v198 = vadd.f32 %v196, 1.0
    %v199 = vmul.f32 %v183, %v197
    %v200 = vmul.f32 %v184, %v198
    %v201 = vld [vmem:[#allocation2] sm:$0xff]
    %v202 = vld [vmem:[#allocation2 + $0x8] sm:$0xff]
    %v203 = vld [vmem:[%s3] sm:$0xff]
    %v204 = vld [vmem:[%s3 + $0x8] sm:$0xff]
    %v205 = vld [vmem:[%s3 + $0x10] sm:$0xff]
    %v206 = vld [vmem:[%s3 + $0x18] sm:$0xff]
    %207 = vmatprep.subr.mxu0 0.0
    %208 = vmatpush1.xpose.msra.mxu0 %v203
    %209 = vmatprep.subr.mxu0 0.0
    %210 = vmatpush1.xpose.msra.mxu0 %v204
    %211 = vmatprep.subr.mxu0 0.0
    %212 = vmatpush1.xpose.msra.mxu0 %v205
    %213 = vmatprep.subr.mxu0 0.0
    %214 = vmatpush1.xpose.msra.mxu0 %v206
    %215 = vmatprep.subr.mxu0 0.0
    %216 = vmatpush1.xpose.msra.mxu0 0.0
    %217 = vmatprep.subr.mxu0 0.0
    %218 = vmatpush1.xpose.msra.mxu0 0.0
    %219 = vmatprep.subr.mxu0 0.0
    %220 = vmatpush1.xpose.msra.mxu0 0.0
    %221 = vmatprep.subr.mxu0 0.0
    %222 = vmatpush1.xpose.msra.mxu0 0.0
    %223 = vmatprep.subr.mxu0 0.0
    %224 = vmatpush1.xpose.msra.mxu0 0.0
    %225 = vmatprep.subr.mxu0 0.0
    %226 = vmatpush1.xpose.msra.mxu0 0.0
    %227 = vmatprep.subr.mxu0 0.0
    %228 = vmatpush1.xpose.msra.mxu0 0.0
    %229 = vmatprep.subr.mxu0 0.0
    %230 = vmatpush1.xpose.msra.mxu0 0.0
    %231 = vmatprep.subr.mxu0 0.0
    %232 = vmatpush1.xpose.msra.mxu0 0.0
    %233 = vmatprep.subr.mxu0 0.0
    %234 = vmatpush1.xpose.msra.mxu0 0.0
    %235 = vmatprep.subr.mxu0 0.0
    %236 = vmatpush1.xpose.msra.mxu0 0.0
    %237 = vmatprep.subr.mxu0 0.0
    %238 = vmatpush1.xpose.msra.mxu0 0.0
    %239 = vmatprep.subr.mxu0 0.0
    %240 = vmatpush1.xpose.msra.mxu0 0.0
    %241 = vmatprep.subr.mxu0 0.0
    %242 = vmatpush1.xpose.msra.mxu0 0.0
    %243 = vmatprep.subr.mxu0 0.0
    %244 = vmatpush1.xpose.msra.mxu0 0.0
    %245 = vmatprep.subr.mxu0 0.0
    %246 = vmatpush1.xpose.msra.mxu0 0.0
    %247 = vmatprep.subr.mxu0 0.0
    %248 = vmatpush1.xpose.msra.mxu0 0.0
    %249 = vmatprep.subr.mxu0 0.0
    %250 = vmatpush1.xpose.msra.mxu0 0.0
    %251 = vmatprep.subr.mxu0 0.0
    %252 = vmatpush1.xpose.msra.mxu0 0.0
    %253 = vmatprep.subr.mxu0 0.0
    %254 = vmatpush1.xpose.msra.mxu0 0.0
    %255 = vmatprep.subr.mxu0 0.0
    %256 = vmatpush1.xpose.msra.mxu0 0.0
    %257 = vmatprep.subr.mxu0 0.0
    %258 = vmatpush1.xpose.msra.mxu0 0.0
    %259 = vmatprep.subr.mxu0 0.0
    %260 = vmatpush1.xpose.msra.mxu0 0.0
    %261 = vmatprep.subr.mxu0 0.0
    %262 = vmatpush1.xpose.msra.mxu0 0.0
    %263 = vmatprep.subr.mxu0 0.0
    %264 = vmatpush1.xpose.msra.mxu0 0.0
    %265 = vmatprep.subr.mxu0 0.0
    %266 = vmatpush1.xpose.msra.mxu0 0.0
    %267 = vmatprep.subr.mxu0 0.0
    %268 = vmatpush1.xpose.msra.mxu0 0.0
    %269 = vmatprep.subr.mxu0 0.0
    %270 = vmatpush1.xpose.msra.mxu0 0.0
    %271 = vmatprep.mubr.f32.mxu0 0.0
    %272 = vmatmul.mubr.f32.gmra.mrb[0].mxu0 %v199
    %v273 = vpop.f32.mrb[0].mxu0
    %v274 = vadd.f32 0.0, %v273
    %v275 = vpop.f32.mrb[0].mxu0
    %276 = vmatprep.mubr.f32.mxu0 0.0
    %277 = vmatmul.mubr.f32.gmra.mrb[0].mxu0 %v200
    %v278 = vpop.f32.mrb[0].mxu0
    %v279 = vadd.f32 0.0, %v278
    %v280 = vpop.f32.mrb[0].mxu0
    %281 = vdwg.mxu0
    %v282 = vadd.f32 %v201, %v274
    %v283 = vadd.f32 %v202, %v279
    %284 = vst.msk [vmem:[#allocation2] sm:$0xff] %vm53, %v282
    %285 = vst.msk [vmem:[#allocation2 + $0x8] sm:$0xff] %vm53, %v283
    // Predicated region
    $region26: #{tpu_custom_call.1} parent=1 // pred_check
      %p286 = pneg %p21
    $region27: #{tpu_custom_call.1} parent=1 // pred_check_branch
      %288 = sbr.rel (%p286) target = $region29
    $region28: #{tpu_custom_call.1} parent=1 // pred_region
      %v289 = vld [vmem:[#allocation2] sm:$0xff]
      %v290 = vld [vmem:[#allocation2 + $0x8] sm:$0xff]
      %v291 = vld [vmem:[%s4] sm:$0x1]
      %v293 = vlaneseq
      %v294 = vshrl.u32 %v293, 7
      %v295 = vsub.s32 0, %v294
      %v296 = vrot.slane %v291, %v295
      %v298 = vadd.f32 %v289, %v296
      %v299 = vadd.f32 %v290, %v296
      %300 = vst.msk [vmem:[#allocation3] sm:$0xff] %vm53, %v298
      %301 = vst.msk [vmem:[#allocation3 + $0x8] sm:$0xff] %vm53, %v299
    $region29: #{tpu_custom_call.1} parent=1 // pred_fallthru
      _
    // Predicated region
    $region30: #{tpu_custom_call.1} parent=1 // pred_check
      _
    $region31: #{tpu_custom_call.1} parent=1 // pred_check_branch
      %303 = sbr.rel (0) target = $region33
    $region32: #{tpu_custom_call.1} parent=1 // pred_region
      %s305 = ssub.s32 256, 256
      %306 = vsyncadd [#allocation4], %s305
      %s307 = sshll.u32 [#allocation3], 4
      %s308 = int_to_ptr.vmem [resolvable:$true] %s307
      %313 = dma.vmem_to_hbm [thread:$0]  %s308, 256, %s5, [#allocation4], 128, 128, 8
    $region33: #{tpu_custom_call.1} parent=1 // pred_fallthru
      _
    // Predicated region
    $region34: #{tpu_custom_call.1} parent=1 // pred_check
      _
    $region35: #{tpu_custom_call.1} parent=1 // pred_check_branch
      %315 = sbr.rel (0) target = $region37
    $region36: #{tpu_custom_call.1} parent=1 // pred_region
      %316 = dma.done [#allocation4], 256
    $region37: #{tpu_custom_call.1} parent=1 // pred_fallthru
      _
    %317 = vsyncpa [#allocation4], 1

</llo_original>
